<compile_context>
chip_gen: v5e
topology: v5e:2x2
jax: 0.10.0
libtpu: 0.0.40
codegen_flags: <defaults>
</compile_context>

<pallas_src>
import jax
import jax.numpy as jnp
from jax.experimental import pallas as pl
from jax.experimental.pallas import tpu as pltpu

INPUT_SIZE = 3
HIDDEN = 32
BN_EPS = 1e-5

LANE = 128
CHUNK = 256          # in-kernel lane sub-tile: hc stays at 16 f32 vregs per chunk
DEFAULT_TB = 16384   # batch tile (lanes); ~2-3 MiB live VMEM/step with chunking

# ---- packed parameter slab layout (weights stored [out, in], bias in col BIAS_COL) ----
P_COLS = 65          # cols 0..63: weight (max in_features after fusion = 64); col 64: bias
BIAS_COL = 64
ROW_W1 = 0           # fused encoder.0 | classifier.0 weight            [64, 3]
ROW_W2 = 64          # fused encoder.2 | BN-folded classifier.4 weight  [9, 64]
ROW_W3 = 80          # decoder.0 weight                                 [16, 8]
ROW_W4 = 96          # decoder.2 weight                                 [3, 16]
P_ROWS = 104         # 8-aligned row offsets, zero padded


def detector_kernel(x_ref, p_ref, out_ref):
    tb = x_ref.shape[1]
    n_chunks = tb // CHUNK

    def wcol(row, n_out, k):
        # One weight column [n_out, 1]; cheap vld straight from the VMEM-resident slab.
        return p_ref[row:row + n_out, k:k + 1]

    def bias(row, n_out):
        return p_ref[row:row + n_out, BIAS_COL:BIAS_COL + 1]           # [n_out, 1]

    @pl.loop(0, n_chunks)
    def _(c):
        s = pl.multiple_of(c * CHUNK, CHUNK)
        xs = x_ref[:, pl.ds(s, CHUNK)]                                 # [3, CHUNK]

        # Stage 1: encoder.0 + classifier.0 fused, on the VPU as a 3-term
        # outer-product accumulation (K=3 is pure padding on the MXU). f32.
        hc = bias(ROW_W1, 2 * HIDDEN)                                  # [64, 1]
        for k in range(INPUT_SIZE):
            hc = hc + wcol(ROW_W1, 2 * HIDDEN, k) * xs[k:k + 1, :]
        hc = jnp.maximum(hc, 0.0)                                      # [64, CHUNK] f32

        # Stage 2: block-diagonal fusion of encoder.2 (rows 0:8) and the BN-folded
        # classifier.4 (row 8), on the bf16-native MXU with f32 accumulation.
        w2 = p_ref[ROW_W2:ROW_W2 + HIDDEN // 4 + 1, 0:2 * HIDDEN].astype(jnp.bfloat16)
        y2 = jnp.dot(w2, hc.astype(jnp.bfloat16),
                     preferred_element_type=jnp.float32)
        y2 = y2 + bias(ROW_W2, HIDDEN // 4 + 1)                        # [9, CHUNK]
        z = jnp.maximum(y2[0:HIDDEN // 4, :], 0.0)                     # [8, CHUNK]
        logits = y2[HIDDEN // 4:HIDDEN // 4 + 1, :]                    # [1, CHUNK]

        # Decoder: small-K layers on the VPU, f32 throughout.
        d = bias(ROW_W3, HIDDEN // 2)                                  # [16, 1]
        for k in range(HIDDEN // 4):
            d = d + wcol(ROW_W3, HIDDEN // 2, k) * z[k:k + 1, :]
        d = jnp.maximum(d, 0.0)                                        # [16, CHUNK]

        dec = bias(ROW_W4, INPUT_SIZE)                                 # [3, 1]
        for k in range(HIDDEN // 2):
            dec = dec + wcol(ROW_W4, INPUT_SIZE, k) * d[k:k + 1, :]    # [3, CHUNK]

        # Lane-dense slice stores; no concatenate / sublane shuffle.
        out_ref[0:INPUT_SIZE, pl.ds(s, CHUNK)] = dec
        out_ref[INPUT_SIZE:INPUT_SIZE + 1, pl.ds(s, CHUNK)] = jax.nn.sigmoid(logits)


def make_params(seed=0):
    """Deterministic parameters in PyTorch orientation (weights [out, in], biases [out])."""
    keys = jax.random.split(jax.random.PRNGKey(seed), 12)

    def lin(kw, kb, fan_in, fan_out):
        bound = 1.0 / jnp.sqrt(float(fan_in))
        w = jax.random.uniform(kw, (fan_out, fan_in), jnp.float32, -bound, bound)
        b = jax.random.uniform(kb, (fan_out,), jnp.float32, -bound, bound)
        return w, b

    ew1, eb1 = lin(keys[0], keys[1], INPUT_SIZE, HIDDEN)          # encoder.0: Linear(3, 32)
    ew2, eb2 = lin(keys[2], keys[3], HIDDEN, HIDDEN // 4)         # encoder.2: Linear(32, 8)
    dw1, db1 = lin(keys[4], keys[5], HIDDEN // 4, HIDDEN // 2)    # decoder.0: Linear(8, 16)
    dw2, db2 = lin(keys[6], keys[7], HIDDEN // 2, INPUT_SIZE)     # decoder.2: Linear(16, 3)
    cw1, cb1 = lin(keys[8], keys[9], INPUT_SIZE, HIDDEN)          # classifier.0: Linear(3, 32)
    cw2, cb2 = lin(keys[10], keys[11], HIDDEN, 1)                 # classifier.4: Linear(32, 1)

    return dict(
        ew1=ew1, eb1=eb1, ew2=ew2, eb2=eb2,
        dw1=dw1, db1=db1, dw2=dw2, db2=db2,
        cw1=cw1, cb1=cb1, cw2=cw2, cb2=cb2,
        gamma=jnp.ones((HIDDEN,), jnp.float32),
        beta=jnp.zeros((HIDDEN,), jnp.float32),
        rmean=jnp.zeros((HIDDEN,), jnp.float32),
        rvar=jnp.ones((HIDDEN,), jnp.float32),
    )


def pack_params(p):
    """Fold BN, fuse shared-input / shared-activation layers, pack into one VMEM slab."""
    # BatchNorm1d (eval) folded into classifier's second Linear -- exact since Dropout
    # is identity at eval: logits = c @ (cw2*scale).T + (cb2 + (beta - rmean*scale) @ cw2.T)
    scale = p["gamma"] * jax.lax.rsqrt(p["rvar"] + BN_EPS)               # [32]
    shift = p["beta"] - p["rmean"] * scale                               # [32]
    cw2f = p["cw2"] * scale[None, :]                                     # [1, 32]
    cb2f = p["cb2"] + jnp.sum(shift * p["cw2"][0], keepdims=True)        # [1]

    # Stage-1 fusion: both Linears that consume x.
    w1 = jnp.concatenate([p["ew1"], p["cw1"]], axis=0)                   # [64, 3]
    b1 = jnp.concatenate([p["eb1"], p["cb1"]], axis=0)                   # [64]

    # Stage-2 fusion: block-diagonal [9, 64] (zeros are exact).
    w2 = jnp.zeros((HIDDEN // 4 + 1, 2 * HIDDEN), jnp.float32)
    w2 = w2.at[:HIDDEN // 4, :HIDDEN].set(p["ew2"])
    w2 = w2.at[HIDDEN // 4:, HIDDEN:].set(cw2f)
    b2 = jnp.concatenate([p["eb2"], cb2f], axis=0)                       # [9]

    slab = jnp.zeros((P_ROWS, P_COLS), jnp.float32)

    def put(slab, row, w, b):
        o, i = w.shape
        slab = slab.at[row:row + o, :i].set(w)
        slab = slab.at[row:row + o, BIAS_COL].set(b)
        return slab

    slab = put(slab, ROW_W1, w1, b1)
    slab = put(slab, ROW_W2, w2, b2)
    slab = put(slab, ROW_W3, p["dw1"], p["db1"])
    slab = put(slab, ROW_W4, p["dw2"], p["db2"])
    return slab


def _round_up(n, m):
    return ((n + m - 1) // m) * m


def deep_anomaly_detector_fm(xt, slab, *, max_tb=DEFAULT_TB):
    """Feature-major entry point: xt is [3, B] f32.

    Returns (decoded_fm [3, B], classification_fm [1, B]).  Callers that can
    produce / consume feature-major data should use this directly and skip the
    wrapper-side transpose HBM passes entirely.
    """
    assert xt.shape[0] == INPUT_SIZE
    B = xt.shape[1]

    # Batch tile: a multiple of CHUNK (hence of 128), >= CHUNK, <= max_tb.
    # Target >= 2 grid steps for moderate/large B so v7x's two TensorCores both
    # get work on the "parallel" batch axis.
    max_tb = max(CHUNK, (max_tb // CHUNK) * CHUNK)
    tb = min(max_tb, _round_up((B + 1) // 2, CHUNK))
    tb = max(tb, CHUNK)
    Bp = _round_up(B, tb)

    xp = xt.astype(jnp.float32)
    if Bp != B:
        xp = jnp.pad(xp, ((0, 0), (0, Bp - B)))

    out = pl.pallas_call(
        detector_kernel,
        out_shape=jax.ShapeDtypeStruct((INPUT_SIZE + 1, Bp), jnp.float32),
        grid_spec=pltpu.PrefetchScalarGridSpec(
            num_scalar_prefetch=0,
            grid=(Bp // tb,),
            in_specs=[
                pl.BlockSpec((INPUT_SIZE, tb), lambda i: (0, i)),   # x tile (pipelined)
                # Constant index_map -> slab fetched once, reused every step.
                pl.BlockSpec((P_ROWS, P_COLS), lambda i: (0, 0)),
            ],
            out_specs=pl.BlockSpec((INPUT_SIZE + 1, tb), lambda i: (0, i)),
        ),
        compiler_params=pltpu.CompilerParams(
            dimension_semantics=("parallel",),
            # Live VMEM per step is only ~2-3 MiB thanks to the in-kernel lane
            # chunking; 32 MiB is comfortable on v5e/v6e/v7x alike.
            vmem_limit_bytes=32 * 1024 * 1024,
        ),
    )(xp, slab)

    return out[:INPUT_SIZE, :B], out[INPUT_SIZE:, :B]


def deep_anomaly_detector(x, slab, *, max_tb=DEFAULT_TB):
    """PyTorch-layout wrapper: x [B, 3] -> (decoded [B, 3], classification [B, 1]).

    The transposes here are pure layout plumbing (extra HBM passes); prefer
    deep_anomaly_detector_fm when the caller can work feature-major.
    """
    dec_fm, cls_fm = deep_anomaly_detector_fm(
        x.astype(jnp.float32).T, slab, max_tb=max_tb)
    return dec_fm.T, cls_fm.T


def reference_forward(x, p):
    """Pure-JAX eval-mode reference matching the PyTorch module."""
    h = jax.nn.relu(x @ p["ew1"].T + p["eb1"])
    z = jax.nn.relu(h @ p["ew2"].T + p["eb2"])
    d = jax.nn.relu(z @ p["dw1"].T + p["db1"])
    dec = d @ p["dw2"].T + p["db2"]
    c = jax.nn.relu(x @ p["cw1"].T + p["cb1"])
    c = (c - p["rmean"]) * jax.lax.rsqrt(p["rvar"] + BN_EPS) * p["gamma"] + p["beta"]
    cls = jax.nn.sigmoid(c @ p["cw2"].T + p["cb2"])
    return dec, cls


if __name__ == "__main__":
    key = jax.random.PRNGKey(0)
    B = 8
    x = jax.random.normal(key, (B, INPUT_SIZE), jnp.float32)

    params = make_params(seed=0)
    slab = pack_params(params)

    fwd = jax.jit(deep_anomaly_detector)
    decoded, classification = fwd(x, slab)
    jax.block_until_ready((decoded, classification))

    assert decoded.shape == (B, INPUT_SIZE)
    assert classification.shape == (B, 1)
    assert bool(jnp.all(jnp.isfinite(decoded)))
    assert bool(jnp.all(jnp.isfinite(classification)))

    # Stage-2 runs on the MXU in bf16 (f32 accumulate): expected worst-case error
    # is ~1e-2-class, so 5e-2 is a comfortable bound; everything else is f32 VPU.
    ref_dec, ref_cls = reference_forward(x, params)
    assert float(jnp.max(jnp.abs(decoded - ref_dec))) < 5e-2
    assert float(jnp.max(jnp.abs(classification - ref_cls))) < 5e-2

    print("KERNEL_OK")
</pallas_src>

<mosaic_0001>
module attributes {stable_mosaic.version = 11 : i64} {
  func.func @detector_kernel(%arg0: i32, %arg1: memref<3x256xf32, #tpu.memory_space<vmem>>, %arg2: memref<104x65xf32, #tpu.memory_space<vmem>>, %arg3: memref<4x256xf32, #tpu.memory_space<vmem>>) attributes {dimension_semantics = [#tpu.dimension_semantics<parallel>], iteration_bounds = array<i64: 1>, scalar_prefetch = 0 : i64, scratch_operands = 0 : i64, tpu.core_type = #tpu.core_type<tc>, window_params = [{transform_indices = @transform_0, window_bounds = array<i64: 3, 256>}, {pipeline_mode = #tpu.pipeline_mode<synchronous>, transform_indices = @transform_1, window_bounds = array<i64: 104, 65>}, {transform_indices = @transform_2, window_bounds = array<i64: 4, 256>}]} {
    %c0_i32 = arith.constant 0 : i32
    %c1_i32 = arith.constant 1 : i32
    %0 = arith.muli %c0_i32, %c1_i32 : i32
    %c0_i32_0 = arith.constant 0 : i32
    %1 = arith.addi %c0_i32_0, %0 : i32
    %c256_i32 = arith.constant 256 : i32
    %2 = arith.muli %1, %c256_i32 : i32
    %3 = tpu.assume_multiple %2, 256 : i32
    %c0 = arith.constant 0 : index
    %4 = arith.index_cast %3 : i32 to index
    %5 = vector.load %arg1[%c0, %4] : memref<3x256xf32, #tpu.memory_space<vmem>>, vector<3x256xf32>
    %c0_1 = arith.constant 0 : index
    %c64 = arith.constant 64 : index
    %6 = vector.load %arg2[%c0_1, %c64] : memref<104x65xf32, #tpu.memory_space<vmem>>, vector<64x1xf32>
    %c0_2 = arith.constant 0 : index
    %c0_3 = arith.constant 0 : index
    %7 = vector.load %arg2[%c0_2, %c0_3] : memref<104x65xf32, #tpu.memory_space<vmem>>, vector<64x1xf32>
    %8 = vector.extract_strided_slice %5 {offsets = [0, 0], sizes = [1, 256], strides = [1, 1]} : vector<3x256xf32> to vector<1x256xf32>
    %9 = vector.broadcast %7 : vector<64x1xf32> to vector<64x256xf32>
    %10 = vector.broadcast %8 : vector<1x256xf32> to vector<64x256xf32>
    %11 = arith.mulf %9, %10 : vector<64x256xf32>
    %12 = vector.broadcast %6 : vector<64x1xf32> to vector<64x256xf32>
    %13 = arith.addf %12, %11 : vector<64x256xf32>
    %c0_4 = arith.constant 0 : index
    %c1 = arith.constant 1 : index
    %14 = vector.load %arg2[%c0_4, %c1] : memref<104x65xf32, #tpu.memory_space<vmem>>, vector<64x1xf32>
    %15 = vector.extract_strided_slice %5 {offsets = [1, 0], sizes = [1, 256], strides = [1, 1]} : vector<3x256xf32> to vector<1x256xf32>
    %16 = vector.broadcast %14 : vector<64x1xf32> to vector<64x256xf32>
    %17 = vector.broadcast %15 : vector<1x256xf32> to vector<64x256xf32>
    %18 = arith.mulf %16, %17 : vector<64x256xf32>
    %19 = arith.addf %13, %18 : vector<64x256xf32>
    %c0_5 = arith.constant 0 : index
    %c2 = arith.constant 2 : index
    %20 = vector.load %arg2[%c0_5, %c2] : memref<104x65xf32, #tpu.memory_space<vmem>>, vector<64x1xf32>
    %21 = vector.extract_strided_slice %5 {offsets = [2, 0], sizes = [1, 256], strides = [1, 1]} : vector<3x256xf32> to vector<1x256xf32>
    %22 = vector.broadcast %20 : vector<64x1xf32> to vector<64x256xf32>
    %23 = vector.broadcast %21 : vector<1x256xf32> to vector<64x256xf32>
    %24 = arith.mulf %22, %23 : vector<64x256xf32>
    %25 = arith.addf %19, %24 : vector<64x256xf32>
    %cst = arith.constant 0.000000e+00 : f32
    %26 = vector.broadcast %cst : f32 to vector<64x256xf32>
    %27 = arith.maximumf %25, %26 : vector<64x256xf32>
    %c64_6 = arith.constant 64 : index
    %c0_7 = arith.constant 0 : index
    %28 = vector.load %arg2[%c64_6, %c0_7] : memref<104x65xf32, #tpu.memory_space<vmem>>, vector<9x64xf32>
    %29 = arith.truncf %28 : vector<9x64xf32> to vector<9x64xbf16>
    %30 = arith.truncf %27 : vector<64x256xf32> to vector<64x256xbf16>
    %cst_8 = arith.constant dense<0.000000e+00> : vector<9x256xf32>
    %31 = tpu.matmul %29, %30, %cst_8 {dimension_numbers = #tpu.dot_dimension_numbers<[1], [0], [0], [1], [0, 0, 1, 1], [], []>} : vector<9x64xbf16>, vector<64x256xbf16>, vector<9x256xf32> -> vector<9x256xf32>
    %c64_9 = arith.constant 64 : index
    %c64_10 = arith.constant 64 : index
    %32 = vector.load %arg2[%c64_9, %c64_10] : memref<104x65xf32, #tpu.memory_space<vmem>>, vector<9x1xf32>
    %33 = vector.broadcast %32 : vector<9x1xf32> to vector<9x256xf32>
    %34 = arith.addf %31, %33 : vector<9x256xf32>
    %35 = vector.extract_strided_slice %34 {offsets = [0, 0], sizes = [8, 256], strides = [1, 1]} : vector<9x256xf32> to vector<8x256xf32>
    %cst_11 = arith.constant 0.000000e+00 : f32
    %36 = vector.broadcast %cst_11 : f32 to vector<8x256xf32>
    %37 = arith.maximumf %35, %36 : vector<8x256xf32>
    %38 = vector.extract_strided_slice %34 {offsets = [8, 0], sizes = [1, 256], strides = [1, 1]} : vector<9x256xf32> to vector<1x256xf32>
    %c80 = arith.constant 80 : index
    %c64_12 = arith.constant 64 : index
    %39 = vector.load %arg2[%c80, %c64_12] : memref<104x65xf32, #tpu.memory_space<vmem>>, vector<16x1xf32>
    %c80_13 = arith.constant 80 : index
    %c0_14 = arith.constant 0 : index
    %40 = vector.load %arg2[%c80_13, %c0_14] : memref<104x65xf32, #tpu.memory_space<vmem>>, vector<16x1xf32>
    %41 = vector.extract_strided_slice %37 {offsets = [0, 0], sizes = [1, 256], strides = [1, 1]} : vector<8x256xf32> to vector<1x256xf32>
    %42 = vector.broadcast %40 : vector<16x1xf32> to vector<16x256xf32>
    %43 = vector.broadcast %41 : vector<1x256xf32> to vector<16x256xf32>
    %44 = arith.mulf %42, %43 : vector<16x256xf32>
    %45 = vector.broadcast %39 : vector<16x1xf32> to vector<16x256xf32>
    %46 = arith.addf %45, %44 : vector<16x256xf32>
    %c80_15 = arith.constant 80 : index
    %c1_16 = arith.constant 1 : index
    %47 = vector.load %arg2[%c80_15, %c1_16] : memref<104x65xf32, #tpu.memory_space<vmem>>, vector<16x1xf32>
    %48 = vector.extract_strided_slice %37 {offsets = [1, 0], sizes = [1, 256], strides = [1, 1]} : vector<8x256xf32> to vector<1x256xf32>
    %49 = vector.broadcast %47 : vector<16x1xf32> to vector<16x256xf32>
    %50 = vector.broadcast %48 : vector<1x256xf32> to vector<16x256xf32>
    %51 = arith.mulf %49, %50 : vector<16x256xf32>
    %52 = arith.addf %46, %51 : vector<16x256xf32>
    %c80_17 = arith.constant 80 : index
    %c2_18 = arith.constant 2 : index
    %53 = vector.load %arg2[%c80_17, %c2_18] : memref<104x65xf32, #tpu.memory_space<vmem>>, vector<16x1xf32>
    %54 = vector.extract_strided_slice %37 {offsets = [2, 0], sizes = [1, 256], strides = [1, 1]} : vector<8x256xf32> to vector<1x256xf32>
    %55 = vector.broadcast %53 : vector<16x1xf32> to vector<16x256xf32>
    %56 = vector.broadcast %54 : vector<1x256xf32> to vector<16x256xf32>
    %57 = arith.mulf %55, %56 : vector<16x256xf32>
    %58 = arith.addf %52, %57 : vector<16x256xf32>
    %c80_19 = arith.constant 80 : index
    %c3 = arith.constant 3 : index
    %59 = vector.load %arg2[%c80_19, %c3] : memref<104x65xf32, #tpu.memory_space<vmem>>, vector<16x1xf32>
    %60 = vector.extract_strided_slice %37 {offsets = [3, 0], sizes = [1, 256], strides = [1, 1]} : vector<8x256xf32> to vector<1x256xf32>
    %61 = vector.broadcast %59 : vector<16x1xf32> to vector<16x256xf32>
    %62 = vector.broadcast %60 : vector<1x256xf32> to vector<16x256xf32>
    %63 = arith.mulf %61, %62 : vector<16x256xf32>
    %64 = arith.addf %58, %63 : vector<16x256xf32>
    %c80_20 = arith.constant 80 : index
    %c4 = arith.constant 4 : index
    %65 = vector.load %arg2[%c80_20, %c4] : memref<104x65xf32, #tpu.memory_space<vmem>>, vector<16x1xf32>
    %66 = vector.extract_strided_slice %37 {offsets = [4, 0], sizes = [1, 256], strides = [1, 1]} : vector<8x256xf32> to vector<1x256xf32>
    %67 = vector.broadcast %65 : vector<16x1xf32> to vector<16x256xf32>
    %68 = vector.broadcast %66 : vector<1x256xf32> to vector<16x256xf32>
    %69 = arith.mulf %67, %68 : vector<16x256xf32>
    %70 = arith.addf %64, %69 : vector<16x256xf32>
    %c80_21 = arith.constant 80 : index
    %c5 = arith.constant 5 : index
    %71 = vector.load %arg2[%c80_21, %c5] : memref<104x65xf32, #tpu.memory_space<vmem>>, vector<16x1xf32>
    %72 = vector.extract_strided_slice %37 {offsets = [5, 0], sizes = [1, 256], strides = [1, 1]} : vector<8x256xf32> to vector<1x256xf32>
    %73 = vector.broadcast %71 : vector<16x1xf32> to vector<16x256xf32>
    %74 = vector.broadcast %72 : vector<1x256xf32> to vector<16x256xf32>
    %75 = arith.mulf %73, %74 : vector<16x256xf32>
    %76 = arith.addf %70, %75 : vector<16x256xf32>
    %c80_22 = arith.constant 80 : index
    %c6 = arith.constant 6 : index
    %77 = vector.load %arg2[%c80_22, %c6] : memref<104x65xf32, #tpu.memory_space<vmem>>, vector<16x1xf32>
    %78 = vector.extract_strided_slice %37 {offsets = [6, 0], sizes = [1, 256], strides = [1, 1]} : vector<8x256xf32> to vector<1x256xf32>
    %79 = vector.broadcast %77 : vector<16x1xf32> to vector<16x256xf32>
    %80 = vector.broadcast %78 : vector<1x256xf32> to vector<16x256xf32>
    %81 = arith.mulf %79, %80 : vector<16x256xf32>
    %82 = arith.addf %76, %81 : vector<16x256xf32>
    %c80_23 = arith.constant 80 : index
    %c7 = arith.constant 7 : index
    %83 = vector.load %arg2[%c80_23, %c7] : memref<104x65xf32, #tpu.memory_space<vmem>>, vector<16x1xf32>
    %84 = vector.extract_strided_slice %37 {offsets = [7, 0], sizes = [1, 256], strides = [1, 1]} : vector<8x256xf32> to vector<1x256xf32>
    %85 = vector.broadcast %83 : vector<16x1xf32> to vector<16x256xf32>
    %86 = vector.broadcast %84 : vector<1x256xf32> to vector<16x256xf32>
    %87 = arith.mulf %85, %86 : vector<16x256xf32>
    %88 = arith.addf %82, %87 : vector<16x256xf32>
    %cst_24 = arith.constant 0.000000e+00 : f32
    %89 = vector.broadcast %cst_24 : f32 to vector<16x256xf32>
    %90 = arith.maximumf %88, %89 : vector<16x256xf32>
    %c96 = arith.constant 96 : index
    %c64_25 = arith.constant 64 : index
    %91 = vector.load %arg2[%c96, %c64_25] : memref<104x65xf32, #tpu.memory_space<vmem>>, vector<3x1xf32>
    %c96_26 = arith.constant 96 : index
    %c0_27 = arith.constant 0 : index
    %92 = vector.load %arg2[%c96_26, %c0_27] : memref<104x65xf32, #tpu.memory_space<vmem>>, vector<3x1xf32>
    %93 = vector.extract_strided_slice %90 {offsets = [0, 0], sizes = [1, 256], strides = [1, 1]} : vector<16x256xf32> to vector<1x256xf32>
    %94 = vector.broadcast %92 : vector<3x1xf32> to vector<3x256xf32>
    %95 = vector.broadcast %93 : vector<1x256xf32> to vector<3x256xf32>
    %96 = arith.mulf %94, %95 : vector<3x256xf32>
    %97 = vector.broadcast %91 : vector<3x1xf32> to vector<3x256xf32>
    %98 = arith.addf %97, %96 : vector<3x256xf32>
    %c96_28 = arith.constant 96 : index
    %c1_29 = arith.constant 1 : index
    %99 = vector.load %arg2[%c96_28, %c1_29] : memref<104x65xf32, #tpu.memory_space<vmem>>, vector<3x1xf32>
    %100 = vector.extract_strided_slice %90 {offsets = [1, 0], sizes = [1, 256], strides = [1, 1]} : vector<16x256xf32> to vector<1x256xf32>
    %101 = vector.broadcast %99 : vector<3x1xf32> to vector<3x256xf32>
    %102 = vector.broadcast %100 : vector<1x256xf32> to vector<3x256xf32>
    %103 = arith.mulf %101, %102 : vector<3x256xf32>
    %104 = arith.addf %98, %103 : vector<3x256xf32>
    %c96_30 = arith.constant 96 : index
    %c2_31 = arith.constant 2 : index
    %105 = vector.load %arg2[%c96_30, %c2_31] : memref<104x65xf32, #tpu.memory_space<vmem>>, vector<3x1xf32>
    %106 = vector.extract_strided_slice %90 {offsets = [2, 0], sizes = [1, 256], strides = [1, 1]} : vector<16x256xf32> to vector<1x256xf32>
    %107 = vector.broadcast %105 : vector<3x1xf32> to vector<3x256xf32>
    %108 = vector.broadcast %106 : vector<1x256xf32> to vector<3x256xf32>
    %109 = arith.mulf %107, %108 : vector<3x256xf32>
    %110 = arith.addf %104, %109 : vector<3x256xf32>
    %c96_32 = arith.constant 96 : index
    %c3_33 = arith.constant 3 : index
    %111 = vector.load %arg2[%c96_32, %c3_33] : memref<104x65xf32, #tpu.memory_space<vmem>>, vector<3x1xf32>
    %112 = vector.extract_strided_slice %90 {offsets = [3, 0], sizes = [1, 256], strides = [1, 1]} : vector<16x256xf32> to vector<1x256xf32>
    %113 = vector.broadcast %111 : vector<3x1xf32> to vector<3x256xf32>
    %114 = vector.broadcast %112 : vector<1x256xf32> to vector<3x256xf32>
    %115 = arith.mulf %113, %114 : vector<3x256xf32>
    %116 = arith.addf %110, %115 : vector<3x256xf32>
    %c96_34 = arith.constant 96 : index
    %c4_35 = arith.constant 4 : index
    %117 = vector.load %arg2[%c96_34, %c4_35] : memref<104x65xf32, #tpu.memory_space<vmem>>, vector<3x1xf32>
    %118 = vector.extract_strided_slice %90 {offsets = [4, 0], sizes = [1, 256], strides = [1, 1]} : vector<16x256xf32> to vector<1x256xf32>
    %119 = vector.broadcast %117 : vector<3x1xf32> to vector<3x256xf32>
    %120 = vector.broadcast %118 : vector<1x256xf32> to vector<3x256xf32>
    %121 = arith.mulf %119, %120 : vector<3x256xf32>
    %122 = arith.addf %116, %121 : vector<3x256xf32>
    %c96_36 = arith.constant 96 : index
    %c5_37 = arith.constant 5 : index
    %123 = vector.load %arg2[%c96_36, %c5_37] : memref<104x65xf32, #tpu.memory_space<vmem>>, vector<3x1xf32>
    %124 = vector.extract_strided_slice %90 {offsets = [5, 0], sizes = [1, 256], strides = [1, 1]} : vector<16x256xf32> to vector<1x256xf32>
    %125 = vector.broadcast %123 : vector<3x1xf32> to vector<3x256xf32>
    %126 = vector.broadcast %124 : vector<1x256xf32> to vector<3x256xf32>
    %127 = arith.mulf %125, %126 : vector<3x256xf32>
    %128 = arith.addf %122, %127 : vector<3x256xf32>
    %c96_38 = arith.constant 96 : index
    %c6_39 = arith.constant 6 : index
    %129 = vector.load %arg2[%c96_38, %c6_39] : memref<104x65xf32, #tpu.memory_space<vmem>>, vector<3x1xf32>
    %130 = vector.extract_strided_slice %90 {offsets = [6, 0], sizes = [1, 256], strides = [1, 1]} : vector<16x256xf32> to vector<1x256xf32>
    %131 = vector.broadcast %129 : vector<3x1xf32> to vector<3x256xf32>
    %132 = vector.broadcast %130 : vector<1x256xf32> to vector<3x256xf32>
    %133 = arith.mulf %131, %132 : vector<3x256xf32>
    %134 = arith.addf %128, %133 : vector<3x256xf32>
    %c96_40 = arith.constant 96 : index
    %c7_41 = arith.constant 7 : index
    %135 = vector.load %arg2[%c96_40, %c7_41] : memref<104x65xf32, #tpu.memory_space<vmem>>, vector<3x1xf32>
    %136 = vector.extract_strided_slice %90 {offsets = [7, 0], sizes = [1, 256], strides = [1, 1]} : vector<16x256xf32> to vector<1x256xf32>
    %137 = vector.broadcast %135 : vector<3x1xf32> to vector<3x256xf32>
    %138 = vector.broadcast %136 : vector<1x256xf32> to vector<3x256xf32>
    %139 = arith.mulf %137, %138 : vector<3x256xf32>
    %140 = arith.addf %134, %139 : vector<3x256xf32>
    %c96_42 = arith.constant 96 : index
    %c8 = arith.constant 8 : index
    %141 = vector.load %arg2[%c96_42, %c8] : memref<104x65xf32, #tpu.memory_space<vmem>>, vector<3x1xf32>
    %142 = vector.extract_strided_slice %90 {offsets = [8, 0], sizes = [1, 256], strides = [1, 1]} : vector<16x256xf32> to vector<1x256xf32>
    %143 = vector.broadcast %141 : vector<3x1xf32> to vector<3x256xf32>
    %144 = vector.broadcast %142 : vector<1x256xf32> to vector<3x256xf32>
    %145 = arith.mulf %143, %144 : vector<3x256xf32>
    %146 = arith.addf %140, %145 : vector<3x256xf32>
    %c96_43 = arith.constant 96 : index
    %c9 = arith.constant 9 : index
    %147 = vector.load %arg2[%c96_43, %c9] : memref<104x65xf32, #tpu.memory_space<vmem>>, vector<3x1xf32>
    %148 = vector.extract_strided_slice %90 {offsets = [9, 0], sizes = [1, 256], strides = [1, 1]} : vector<16x256xf32> to vector<1x256xf32>
    %149 = vector.broadcast %147 : vector<3x1xf32> to vector<3x256xf32>
    %150 = vector.broadcast %148 : vector<1x256xf32> to vector<3x256xf32>
    %151 = arith.mulf %149, %150 : vector<3x256xf32>
    %152 = arith.addf %146, %151 : vector<3x256xf32>
    %c96_44 = arith.constant 96 : index
    %c10 = arith.constant 10 : index
    %153 = vector.load %arg2[%c96_44, %c10] : memref<104x65xf32, #tpu.memory_space<vmem>>, vector<3x1xf32>
    %154 = vector.extract_strided_slice %90 {offsets = [10, 0], sizes = [1, 256], strides = [1, 1]} : vector<16x256xf32> to vector<1x256xf32>
    %155 = vector.broadcast %153 : vector<3x1xf32> to vector<3x256xf32>
    %156 = vector.broadcast %154 : vector<1x256xf32> to vector<3x256xf32>
    %157 = arith.mulf %155, %156 : vector<3x256xf32>
    %158 = arith.addf %152, %157 : vector<3x256xf32>
    %c96_45 = arith.constant 96 : index
    %c11 = arith.constant 11 : index
    %159 = vector.load %arg2[%c96_45, %c11] : memref<104x65xf32, #tpu.memory_space<vmem>>, vector<3x1xf32>
    %160 = vector.extract_strided_slice %90 {offsets = [11, 0], sizes = [1, 256], strides = [1, 1]} : vector<16x256xf32> to vector<1x256xf32>
    %161 = vector.broadcast %159 : vector<3x1xf32> to vector<3x256xf32>
    %162 = vector.broadcast %160 : vector<1x256xf32> to vector<3x256xf32>
    %163 = arith.mulf %161, %162 : vector<3x256xf32>
    %164 = arith.addf %158, %163 : vector<3x256xf32>
    %c96_46 = arith.constant 96 : index
    %c12 = arith.constant 12 : index
    %165 = vector.load %arg2[%c96_46, %c12] : memref<104x65xf32, #tpu.memory_space<vmem>>, vector<3x1xf32>
    %166 = vector.extract_strided_slice %90 {offsets = [12, 0], sizes = [1, 256], strides = [1, 1]} : vector<16x256xf32> to vector<1x256xf32>
    %167 = vector.broadcast %165 : vector<3x1xf32> to vector<3x256xf32>
    %168 = vector.broadcast %166 : vector<1x256xf32> to vector<3x256xf32>
    %169 = arith.mulf %167, %168 : vector<3x256xf32>
    %170 = arith.addf %164, %169 : vector<3x256xf32>
    %c96_47 = arith.constant 96 : index
    %c13 = arith.constant 13 : index
    %171 = vector.load %arg2[%c96_47, %c13] : memref<104x65xf32, #tpu.memory_space<vmem>>, vector<3x1xf32>
    %172 = vector.extract_strided_slice %90 {offsets = [13, 0], sizes = [1, 256], strides = [1, 1]} : vector<16x256xf32> to vector<1x256xf32>
    %173 = vector.broadcast %171 : vector<3x1xf32> to vector<3x256xf32>
    %174 = vector.broadcast %172 : vector<1x256xf32> to vector<3x256xf32>
    %175 = arith.mulf %173, %174 : vector<3x256xf32>
    %176 = arith.addf %170, %175 : vector<3x256xf32>
    %c96_48 = arith.constant 96 : index
    %c14 = arith.constant 14 : index
    %177 = vector.load %arg2[%c96_48, %c14] : memref<104x65xf32, #tpu.memory_space<vmem>>, vector<3x1xf32>
    %178 = vector.extract_strided_slice %90 {offsets = [14, 0], sizes = [1, 256], strides = [1, 1]} : vector<16x256xf32> to vector<1x256xf32>
    %179 = vector.broadcast %177 : vector<3x1xf32> to vector<3x256xf32>
    %180 = vector.broadcast %178 : vector<1x256xf32> to vector<3x256xf32>
    %181 = arith.mulf %179, %180 : vector<3x256xf32>
    %182 = arith.addf %176, %181 : vector<3x256xf32>
    %c96_49 = arith.constant 96 : index
    %c15 = arith.constant 15 : index
    %183 = vector.load %arg2[%c96_49, %c15] : memref<104x65xf32, #tpu.memory_space<vmem>>, vector<3x1xf32>
    %184 = vector.extract_strided_slice %90 {offsets = [15, 0], sizes = [1, 256], strides = [1, 1]} : vector<16x256xf32> to vector<1x256xf32>
    %185 = vector.broadcast %183 : vector<3x1xf32> to vector<3x256xf32>
    %186 = vector.broadcast %184 : vector<1x256xf32> to vector<3x256xf32>
    %187 = arith.mulf %185, %186 : vector<3x256xf32>
    %188 = arith.addf %182, %187 : vector<3x256xf32>
    %c0_50 = arith.constant 0 : index
    %189 = arith.index_cast %3 : i32 to index
    %190 = vector.load %arg3[%c0_50, %189] : memref<4x256xf32, #tpu.memory_space<vmem>>, vector<3x256xf32>
    tpu.vector_store %arg3[%c0_50, %189], %188 {strides = array<i32>} : memref<4x256xf32, #tpu.memory_space<vmem>>, vector<3x256xf32>,
    %191 = arith.negf %38 : vector<1x256xf32>
    %192 = math.exp %191 : vector<1x256xf32>
    %cst_51 = arith.constant 1.000000e+00 : f32
    %193 = vector.broadcast %cst_51 : f32 to vector<1x256xf32>
    %194 = arith.addf %193, %192 : vector<1x256xf32>
    %195 = arith.divf %193, %194 : vector<1x256xf32>
    %c3_52 = arith.constant 3 : index
    %196 = arith.index_cast %3 : i32 to index
    %197 = vector.load %arg3[%c3_52, %196] : memref<4x256xf32, #tpu.memory_space<vmem>>, vector<1x256xf32>
    tpu.vector_store %arg3[%c3_52, %196], %195 {strides = array<i32>} : memref<4x256xf32, #tpu.memory_space<vmem>>, vector<1x256xf32>,
    %c1_i32_53 = arith.constant 1 : i32
    return
  }
  func.func @transform_0(%arg0: i32) -> (i32, i32) {
    %c0_i32 = arith.constant 0 : i32
    %c0_i32_0 = arith.constant 0 : i32
    return %c0_i32, %arg0 : i32, i32
  }
  func.func @transform_1(%arg0: i32) -> (i32, i32) {
    %c0_i32 = arith.constant 0 : i32
    %c0_i32_0 = arith.constant 0 : i32
    %c0_i32_1 = arith.constant 0 : i32
    return %c0_i32, %c0_i32_0 : i32, i32
  }
  func.func @transform_2(%arg0: i32) -> (i32, i32) {
    %c0_i32 = arith.constant 0 : i32
    %c0_i32_0 = arith.constant 0 : i32
    return %c0_i32, %arg0 : i32, i32
  }
}

</mosaic_0001>

<llo_original>
// kernel: deep_anomaly_detector.1
$region0: #{deep_anomaly_detector.1}
  #allocation0 [shape = 'u32[]', space=smem, size = 0x4, offset = 0x4, fixed_abs, tag = 'smem constant byte address 0x4 - core index']
  #allocation1 [shape = 'u32[72,128]{1,0:T(1,128)}', space=vmem, size = 0x9000, scoped, tag = 'internal scratch']
  %s0 = inlined_call_operand.vmem [shape: f32[3,256], index: 0, kind: input, shape index: {}]
  %s1 = inlined_call_operand.vmem [shape: f32[104,65], index: 1, kind: input, shape index: {}]
  %s2 = inlined_call_operand.vmem [shape: f32[4,256], index: 2, kind: output, shape index: {}]
  %s3 = sld [smem:[#allocation0]]
  $region18: #{deep_anomaly_detector.1} parent=0
    _
  %s5 = ssub.s32 1, %s3
  %s6 = scalar_select 0, %s5, %s3
  // Predicated region
  $region2: #{deep_anomaly_detector.1} parent=0 // pred_check
    _
  $region3: #{deep_anomaly_detector.1} parent=0 // pred_check_branch
    %8 = sbr.rel (0) target = $region5
  $region4: #{deep_anomaly_detector.1} parent=0 // pred_region
    _
  $region5: #{deep_anomaly_detector.1} parent=0 // pred_fallthru
    _
  // Predicated region
  $region6: #{deep_anomaly_detector.1} parent=0 // pred_check
    _
  $region7: #{deep_anomaly_detector.1} parent=0 // pred_check_branch
    %10 = sbr.rel (0) target = $region9
  $region8: #{deep_anomaly_detector.1} parent=0 // pred_region
    _
  $region9: #{deep_anomaly_detector.1} parent=0 // pred_fallthru
    _
  %v12 = vld [vmem:[%s0] sm:$0x77]
  %v13 = vld [vmem:[%s1] sm:$0xff]
  %v14 = vld [vmem:[%s1 + $0x8] sm:$0xff]
  %v15 = vld [vmem:[%s1 + $0x10] sm:$0xff]
  %v16 = vld [vmem:[%s1 + $0x18] sm:$0xff]
  %v17 = vld [vmem:[%s1 + $0x20] sm:$0xff]
  %v18 = vld [vmem:[%s1 + $0x28] sm:$0xff]
  %v19 = vld [vmem:[%s1 + $0x30] sm:$0xff]
  %v20 = vld [vmem:[%s1 + $0x38] sm:$0xff]
  %22 = vset.pattern.permute.xlu0 0
  %23 = vperm.xlu0 %22, %v13
  %v24 = vpop.permute.xlu0 %23
  %27 = vset.pattern.permute.xlu0 0
  %28 = vperm.xlu0 %27, %v14
  %v29 = vpop.permute.xlu0 %28
  %32 = vset.pattern.permute.xlu0 0
  %33 = vperm.xlu0 %32, %v15
  %v34 = vpop.permute.xlu0 %33
  %37 = vset.pattern.permute.xlu0 0
  %38 = vperm.xlu0 %37, %v16
  %v39 = vpop.permute.xlu0 %38
  %42 = vset.pattern.permute.xlu0 0
  %43 = vperm.xlu0 %42, %v17
  %v44 = vpop.permute.xlu0 %43
  %47 = vset.pattern.permute.xlu0 0
  %48 = vperm.xlu0 %47, %v18
  %v49 = vpop.permute.xlu0 %48
  %52 = vset.pattern.permute.xlu0 0
  %53 = vperm.xlu0 %52, %v19
  %v54 = vpop.permute.xlu0 %53
  %57 = vset.pattern.permute.xlu0 0
  %58 = vperm.xlu0 %57, %v20
  %v59 = vpop.permute.xlu0 %58
  %v62 = vperm.slane %v12, 0
  %v63 = vperm.slane %v12, 4
  %v66 = vperm.slane %v62, 0
  %v67 = vperm.slane %v63, 0
  %v68 = vmul.f32 %v24, %v66
  %v69 = vmul.f32 %v24, %v67
  %v70 = vmul.f32 %v29, %v66
  %v71 = vmul.f32 %v29, %v67
  %v72 = vmul.f32 %v34, %v66
  %v73 = vmul.f32 %v34, %v67
  %v74 = vmul.f32 %v39, %v66
  %v75 = vmul.f32 %v39, %v67
  %v76 = vmul.f32 %v44, %v66
  %v77 = vmul.f32 %v44, %v67
  %v78 = vmul.f32 %v49, %v66
  %v79 = vmul.f32 %v49, %v67
  %v80 = vmul.f32 %v54, %v66
  %v81 = vmul.f32 %v54, %v67
  %v82 = vmul.f32 %v59, %v66
  %v83 = vmul.f32 %v59, %v67
  %84 = vset.pattern.permute.xlu0 64
  %85 = vperm.xlu0 %84, %v13
  %v86 = vpop.permute.xlu0 %85
  %88 = vset.pattern.permute.xlu0 64
  %89 = vperm.xlu0 %88, %v14
  %v90 = vpop.permute.xlu0 %89
  %92 = vset.pattern.permute.xlu0 64
  %93 = vperm.xlu0 %92, %v15
  %v94 = vpop.permute.xlu0 %93
  %96 = vset.pattern.permute.xlu0 64
  %97 = vperm.xlu0 %96, %v16
  %v98 = vpop.permute.xlu0 %97
  %100 = vset.pattern.permute.xlu0 64
  %101 = vperm.xlu0 %100, %v17
  %v102 = vpop.permute.xlu0 %101
  %104 = vset.pattern.permute.xlu0 64
  %105 = vperm.xlu0 %104, %v18
  %v106 = vpop.permute.xlu0 %105
  %108 = vset.pattern.permute.xlu0 64
  %109 = vperm.xlu0 %108, %v19
  %v110 = vpop.permute.xlu0 %109
  %112 = vset.pattern.permute.xlu0 64
  %113 = vperm.xlu0 %112, %v20
  %v114 = vpop.permute.xlu0 %113
  %v116 = vadd.f32 %v86, %v68
  %v117 = vadd.f32 %v86, %v69
  %v118 = vadd.f32 %v90, %v70
  %v119 = vadd.f32 %v90, %v71
  %v120 = vadd.f32 %v94, %v72
  %v121 = vadd.f32 %v94, %v73
  %v122 = vadd.f32 %v98, %v74
  %v123 = vadd.f32 %v98, %v75
  %v124 = vadd.f32 %v102, %v76
  %v125 = vadd.f32 %v102, %v77
  %v126 = vadd.f32 %v106, %v78
  %v127 = vadd.f32 %v106, %v79
  %v128 = vadd.f32 %v110, %v80
  %v129 = vadd.f32 %v110, %v81
  %v130 = vadd.f32 %v114, %v82
  %v131 = vadd.f32 %v114, %v83
  %132 = vset.pattern.permute.xlu0 1
  %133 = vperm.xlu0 %132, %v13
  %v134 = vpop.permute.xlu0 %133
  %136 = vset.pattern.permute.xlu0 1
  %137 = vperm.xlu0 %136, %v14
  %v138 = vpop.permute.xlu0 %137
  %140 = vset.pattern.permute.xlu0 1
  %141 = vperm.xlu0 %140, %v15
  %v142 = vpop.permute.xlu0 %141
  %144 = vset.pattern.permute.xlu0 1
  %145 = vperm.xlu0 %144, %v16
  %v146 = vpop.permute.xlu0 %145
  %148 = vset.pattern.permute.xlu0 1
  %149 = vperm.xlu0 %148, %v17
  %v150 = vpop.permute.xlu0 %149
  %152 = vset.pattern.permute.xlu0 1
  %153 = vperm.xlu0 %152, %v18
  %v154 = vpop.permute.xlu0 %153
  %156 = vset.pattern.permute.xlu0 1
  %157 = vperm.xlu0 %156, %v19
  %v158 = vpop.permute.xlu0 %157
  %160 = vset.pattern.permute.xlu0 1
  %161 = vperm.xlu0 %160, %v20
  %v162 = vpop.permute.xlu0 %161
  %v164 = vperm.slane %v12, 1
  %v165 = vperm.slane %v12, 5
  %v168 = vperm.slane %v164, 1
  %v169 = vperm.slane %v165, 1
  %v170 = vmul.f32 %v134, %v168
  %v171 = vmul.f32 %v134, %v169
  %v172 = vmul.f32 %v138, %v168
  %v173 = vmul.f32 %v138, %v169
  %v174 = vmul.f32 %v142, %v168
  %v175 = vmul.f32 %v142, %v169
  %v176 = vmul.f32 %v146, %v168
  %v177 = vmul.f32 %v146, %v169
  %v178 = vmul.f32 %v150, %v168
  %v179 = vmul.f32 %v150, %v169
  %v180 = vmul.f32 %v154, %v168
  %v181 = vmul.f32 %v154, %v169
  %v182 = vmul.f32 %v158, %v168
  %v183 = vmul.f32 %v158, %v169
  %v184 = vmul.f32 %v162, %v168
  %v185 = vmul.f32 %v162, %v169
  %v186 = vadd.f32 %v116, %v170
  %v187 = vadd.f32 %v117, %v171
  %v188 = vadd.f32 %v118, %v172
  %v189 = vadd.f32 %v119, %v173
  %v190 = vadd.f32 %v120, %v174
  %v191 = vadd.f32 %v121, %v175
  %v192 = vadd.f32 %v122, %v176
  %v193 = vadd.f32 %v123, %v177
  %v194 = vadd.f32 %v124, %v178
  %v195 = vadd.f32 %v125, %v179
  %v196 = vadd.f32 %v126, %v180
  %v197 = vadd.f32 %v127, %v181
  %v198 = vadd.f32 %v128, %v182
  %v199 = vadd.f32 %v129, %v183
  %v200 = vadd.f32 %v130, %v184
  %v201 = vadd.f32 %v131, %v185
  %202 = vset.pattern.permute.xlu0 2
  %203 = vperm.xlu0 %202, %v13
  %v204 = vpop.permute.xlu0 %203
  %206 = vset.pattern.permute.xlu0 2
  %207 = vperm.xlu0 %206, %v14
  %v208 = vpop.permute.xlu0 %207
  %210 = vset.pattern.permute.xlu0 2
  %211 = vperm.xlu0 %210, %v15
  %v212 = vpop.permute.xlu0 %211
  %214 = vset.pattern.permute.xlu0 2
  %215 = vperm.xlu0 %214, %v16
  %v216 = vpop.permute.xlu0 %215
  %218 = vset.pattern.permute.xlu0 2
  %219 = vperm.xlu0 %218, %v17
  %v220 = vpop.permute.xlu0 %219
  %222 = vset.pattern.permute.xlu0 2
  %223 = vperm.xlu0 %222, %v18
  %v224 = vpop.permute.xlu0 %223
  %226 = vset.pattern.permute.xlu0 2
  %227 = vperm.xlu0 %226, %v19
  %v228 = vpop.permute.xlu0 %227
  %230 = vset.pattern.permute.xlu0 2
  %231 = vperm.xlu0 %230, %v20
  %v232 = vpop.permute.xlu0 %231
  %v234 = vperm.slane %v12, 2
  %v235 = vperm.slane %v12, 6
  %v238 = vperm.slane %v234, 2
  %v239 = vperm.slane %v235, 2
  %v240 = vmul.f32 %v204, %v238
  %v241 = vmul.f32 %v204, %v239
  %v242 = vmul.f32 %v208, %v238
  %v243 = vmul.f32 %v208, %v239
  %v244 = vmul.f32 %v212, %v238
  %v245 = vmul.f32 %v212, %v239
  %v246 = vmul.f32 %v216, %v238
  %v247 = vmul.f32 %v216, %v239
  %v248 = vmul.f32 %v220, %v238
  %v249 = vmul.f32 %v220, %v239
  %v250 = vmul.f32 %v224, %v238
  %v251 = vmul.f32 %v224, %v239
  %v252 = vmul.f32 %v228, %v238
  %v253 = vmul.f32 %v228, %v239
  %v254 = vmul.f32 %v232, %v238
  %v255 = vmul.f32 %v232, %v239
  %v256 = vadd.f32 %v186, %v240
  %v257 = vadd.f32 %v187, %v241
  %v258 = vadd.f32 %v188, %v242
  %v259 = vadd.f32 %v189, %v243
  %v260 = vadd.f32 %v190, %v244
  %v261 = vadd.f32 %v191, %v245
  %v262 = vadd.f32 %v192, %v246
  %v263 = vadd.f32 %v193, %v247
  %v264 = vadd.f32 %v194, %v248
  %v265 = vadd.f32 %v195, %v249
  %v266 = vadd.f32 %v196, %v250
  %v267 = vadd.f32 %v197, %v251
  %v268 = vadd.f32 %v198, %v252
  %v269 = vadd.f32 %v199, %v253
  %v270 = vadd.f32 %v200, %v254
  %v271 = vadd.f32 %v201, %v255
  %v272 = vmax.f32 %v256, 0.0
  %v273 = vmax.f32 %v257, 0.0
  %v274 = vmax.f32 %v258, 0.0
  %v275 = vmax.f32 %v259, 0.0
  %v276 = vmax.f32 %v260, 0.0
  %v277 = vmax.f32 %v261, 0.0
  %v278 = vmax.f32 %v262, 0.0
  %v279 = vmax.f32 %v263, 0.0
  %v280 = vmax.f32 %v264, 0.0
  %v281 = vmax.f32 %v265, 0.0
  %v282 = vmax.f32 %v266, 0.0
  %v283 = vmax.f32 %v267, 0.0
  %v284 = vmax.f32 %v268, 0.0
  %v285 = vmax.f32 %v269, 0.0
  %v286 = vmax.f32 %v270, 0.0
  %v287 = vmax.f32 %v271, 0.0
  %v288 = vld [vmem:[%s1 + $0x40] sm:$0xff]
  %v289 = vld [vmem:[%s1 + $0x48] sm:$0x1]
  %v290 = vpack.c.bf16 %v289, %v288
  %v291 = vpack.c.bf16 %v274, %v272
  %v292 = vpack.c.bf16 %v275, %v273
  %v293 = vpack.c.bf16 %v278, %v276
  %v294 = vpack.c.bf16 %v279, %v277
  %v295 = vpack.c.bf16 %v282, %v280
  %v296 = vpack.c.bf16 %v283, %v281
  %v297 = vpack.c.bf16 %v286, %v284
  %v298 = vpack.c.bf16 %v287, %v285
  %300 = vset.pattern.permute.xlu0 64
  %301 = vperm.xlu0 %300, %v288
  %v302 = vpop.permute.xlu0 %301
  %305 = vset.pattern.permute.xlu0 64
  %306 = vperm.xlu0 %305, %v289
  %v307 = vpop.permute.xlu0 %306
  %vm309 = vcmask 523264
  %v311 = vsel %vm309, %v290, 0
  %313 = vmatpush.bf16.msra.mxu0 0
  %314 = vmatpush.bf16.msra.mxu0 0
  %315 = vmatpush.bf16.msra.mxu0 0
  %316 = vmatpush.bf16.msra.mxu0 0
  %317 = vmatpush.bf16.msra.mxu0 %v297
  %318 = vmatpush.bf16.msra.mxu0 %v295
  %319 = vmatpush.bf16.msra.mxu0 %v293
  %320 = vmatpush.bf16.msra.mxu0 %v291
  %321 = vmatmul.bf16.gmra.mxu0 %v311
  %v322 = vpop.f32.mrf.mxu0
  %v323 = vadd.f32 %v302, %v322
  %v324 = vpop.f32.mrf.mxu0
  %v325 = vadd.f32 %v307, %v324
  %326 = vdwg.mxu0
  %327 = vmatpush.bf16.msra.mxu0 0
  %328 = vmatpush.bf16.msra.mxu0 0
  %329 = vmatpush.bf16.msra.mxu0 0
  %330 = vmatpush.bf16.msra.mxu0 0
  %331 = vmatpush.bf16.msra.mxu0 %v298
  %332 = vmatpush.bf16.msra.mxu0 %v296
  %333 = vmatpush.bf16.msra.mxu0 %v294
  %334 = vmatpush.bf16.msra.mxu0 %v292
  %335 = vmatmul.bf16.gmra.mxu0 %v311
  %v336 = vpop.f32.mrf.mxu0
  %v337 = vadd.f32 %v302, %v336
  %v338 = vpop.f32.mrf.mxu0
  %v339 = vadd.f32 %v307, %v338
  %340 = vdwg.mxu0
  %v341 = vmax.f32 %v323, 0.0
  %v342 = vmax.f32 %v337, 0.0
  %v343 = vld [vmem:[%s1 + $0x50] sm:$0xff]
  %v344 = vld [vmem:[%s1 + $0x58] sm:$0xff]
  %346 = vset.pattern.permute.xlu0 0
  %347 = vperm.xlu0 %346, %v343
  %v348 = vpop.permute.xlu0 %347
  %351 = vset.pattern.permute.xlu0 0
  %352 = vperm.xlu0 %351, %v344
  %v353 = vpop.permute.xlu0 %352
  %v355 = vperm.slane %v341, 0
  %v356 = vperm.slane %v342, 0
  %v357 = vmul.f32 %v348, %v355
  %v358 = vmul.f32 %v348, %v356
  %v359 = vmul.f32 %v353, %v355
  %v360 = vmul.f32 %v353, %v356
  %361 = vset.pattern.permute.xlu0 64
  %362 = vperm.xlu0 %361, %v343
  %v363 = vpop.permute.xlu0 %362
  %365 = vset.pattern.permute.xlu0 64
  %366 = vperm.xlu0 %365, %v344
  %v367 = vpop.permute.xlu0 %366
  %v369 = vadd.f32 %v363, %v357
  %v370 = vadd.f32 %v363, %v358
  %v371 = vadd.f32 %v367, %v359
  %v372 = vadd.f32 %v367, %v360
  %373 = vset.pattern.permute.xlu0 1
  %374 = vperm.xlu0 %373, %v343
  %v375 = vpop.permute.xlu0 %374
  %377 = vset.pattern.permute.xlu0 1
  %378 = vperm.xlu0 %377, %v344
  %v379 = vpop.permute.xlu0 %378
  %v381 = vperm.slane %v341, 1
  %v382 = vperm.slane %v342, 1
  %v383 = vmul.f32 %v375, %v381
  %v384 = vmul.f32 %v375, %v382
  %v385 = vmul.f32 %v379, %v381
  %v386 = vmul.f32 %v379, %v382
  %v387 = vadd.f32 %v369, %v383
  %v388 = vadd.f32 %v370, %v384
  %v389 = vadd.f32 %v371, %v385
  %v390 = vadd.f32 %v372, %v386
  %391 = vset.pattern.permute.xlu0 2
  %392 = vperm.xlu0 %391, %v343
  %v393 = vpop.permute.xlu0 %392
  %395 = vset.pattern.permute.xlu0 2
  %396 = vperm.xlu0 %395, %v344
  %v397 = vpop.permute.xlu0 %396
  %v399 = vperm.slane %v341, 2
  %v400 = vperm.slane %v342, 2
  %v401 = vmul.f32 %v393, %v399
  %v402 = vmul.f32 %v393, %v400
  %v403 = vmul.f32 %v397, %v399
  %v404 = vmul.f32 %v397, %v400
  %v405 = vadd.f32 %v387, %v401
  %v406 = vadd.f32 %v388, %v402
  %v407 = vadd.f32 %v389, %v403
  %v408 = vadd.f32 %v390, %v404
  %409 = vset.pattern.permute.xlu0 3
  %410 = vperm.xlu0 %409, %v343
  %v411 = vpop.permute.xlu0 %410
  %413 = vset.pattern.permute.xlu0 3
  %414 = vperm.xlu0 %413, %v344
  %v415 = vpop.permute.xlu0 %414
  %v417 = vperm.slane %v341, 3
  %v418 = vperm.slane %v342, 3
  %v419 = vmul.f32 %v411, %v417
  %v420 = vmul.f32 %v411, %v418
  %v421 = vmul.f32 %v415, %v417
  %v422 = vmul.f32 %v415, %v418
  %v423 = vadd.f32 %v405, %v419
  %v424 = vadd.f32 %v406, %v420
  %v425 = vadd.f32 %v407, %v421
  %v426 = vadd.f32 %v408, %v422
  %427 = vset.pattern.permute.xlu0 4
  %428 = vperm.xlu0 %427, %v343
  %v429 = vpop.permute.xlu0 %428
  %431 = vset.pattern.permute.xlu0 4
  %432 = vperm.xlu0 %431, %v344
  %v433 = vpop.permute.xlu0 %432
  %v435 = vperm.slane %v341, 4
  %v436 = vperm.slane %v342, 4
  %v437 = vmul.f32 %v429, %v435
  %v438 = vmul.f32 %v429, %v436
  %v439 = vmul.f32 %v433, %v435
  %v440 = vmul.f32 %v433, %v436
  %v441 = vadd.f32 %v423, %v437
  %v442 = vadd.f32 %v424, %v438
  %v443 = vadd.f32 %v425, %v439
  %v444 = vadd.f32 %v426, %v440
  %445 = vset.pattern.permute.xlu0 5
  %446 = vperm.xlu0 %445, %v343
  %v447 = vpop.permute.xlu0 %446
  %449 = vset.pattern.permute.xlu0 5
  %450 = vperm.xlu0 %449, %v344
  %v451 = vpop.permute.xlu0 %450
  %v453 = vperm.slane %v341, 5
  %v454 = vperm.slane %v342, 5
  %v455 = vmul.f32 %v447, %v453
  %v456 = vmul.f32 %v447, %v454
  %v457 = vmul.f32 %v451, %v453
  %v458 = vmul.f32 %v451, %v454
  %v459 = vadd.f32 %v441, %v455
  %v460 = vadd.f32 %v442, %v456
  %v461 = vadd.f32 %v443, %v457
  %v462 = vadd.f32 %v444, %v458
  %463 = vset.pattern.permute.xlu0 6
  %464 = vperm.xlu0 %463, %v343
  %v465 = vpop.permute.xlu0 %464
  %467 = vset.pattern.permute.xlu0 6
  %468 = vperm.xlu0 %467, %v344
  %v469 = vpop.permute.xlu0 %468
  %v471 = vperm.slane %v341, 6
  %v472 = vperm.slane %v342, 6
  %v473 = vmul.f32 %v465, %v471
  %v474 = vmul.f32 %v465, %v472
  %v475 = vmul.f32 %v469, %v471
  %v476 = vmul.f32 %v469, %v472
  %v477 = vadd.f32 %v459, %v473
  %v478 = vadd.f32 %v460, %v474
  %v479 = vadd.f32 %v461, %v475
  %v480 = vadd.f32 %v462, %v476
  %481 = vset.pattern.permute.xlu0 7
  %482 = vperm.xlu0 %481, %v343
  %v483 = vpop.permute.xlu0 %482
  %485 = vset.pattern.permute.xlu0 7
  %486 = vperm.xlu0 %485, %v344
  %v487 = vpop.permute.xlu0 %486
  %v489 = vperm.slane %v341, 7
  %v490 = vperm.slane %v342, 7
  %v491 = vmul.f32 %v483, %v489
  %v492 = vmul.f32 %v483, %v490
  %v493 = vmul.f32 %v487, %v489
  %v494 = vmul.f32 %v487, %v490
  %v495 = vadd.f32 %v477, %v491
  %v496 = vadd.f32 %v478, %v492
  %v497 = vadd.f32 %v479, %v493
  %v498 = vadd.f32 %v480, %v494
  %v499 = vmax.f32 %v495, 0.0
  %v500 = vmax.f32 %v496, 0.0
  %v501 = vmax.f32 %v497, 0.0
  %v502 = vmax.f32 %v498, 0.0
  %v503 = vld [vmem:[%s1 + $0x60] sm:$0x7]
  %505 = vset.pattern.permute.xlu0 0
  %506 = vperm.xlu0 %505, %v503
  %v507 = vpop.permute.xlu0 %506
  %v509 = vperm.slane %v499, 0
  %v510 = vperm.slane %v500, 0
  %v511 = vmul.f32 %v507, %v509
  %v512 = vmul.f32 %v507, %v510
  %513 = vset.pattern.permute.xlu0 64
  %514 = vperm.xlu0 %513, %v503
  %v515 = vpop.permute.xlu0 %514
  %v517 = vadd.f32 %v515, %v511
  %v518 = vadd.f32 %v515, %v512
  %519 = vset.pattern.permute.xlu0 1
  %520 = vperm.xlu0 %519, %v503
  %v521 = vpop.permute.xlu0 %520
  %v523 = vperm.slane %v499, 1
  %v524 = vperm.slane %v500, 1
  %v525 = vmul.f32 %v521, %v523
  %v526 = vmul.f32 %v521, %v524
  %v527 = vadd.f32 %v517, %v525
  %v528 = vadd.f32 %v518, %v526
  %529 = vset.pattern.permute.xlu0 2
  %530 = vperm.xlu0 %529, %v503
  %v531 = vpop.permute.xlu0 %530
  %v533 = vperm.slane %v499, 2
  %v534 = vperm.slane %v500, 2
  %v535 = vmul.f32 %v531, %v533
  %v536 = vmul.f32 %v531, %v534
  %v537 = vadd.f32 %v527, %v535
  %v538 = vadd.f32 %v528, %v536
  %539 = vset.pattern.permute.xlu0 3
  %540 = vperm.xlu0 %539, %v503
  %v541 = vpop.permute.xlu0 %540
  %v543 = vperm.slane %v499, 3
  %v544 = vperm.slane %v500, 3
  %v545 = vmul.f32 %v541, %v543
  %v546 = vmul.f32 %v541, %v544
  %v547 = vadd.f32 %v537, %v545
  %v548 = vadd.f32 %v538, %v546
  %549 = vset.pattern.permute.xlu0 4
  %550 = vperm.xlu0 %549, %v503
  %v551 = vpop.permute.xlu0 %550
  %v553 = vperm.slane %v499, 4
  %v554 = vperm.slane %v500, 4
  %v555 = vmul.f32 %v551, %v553
  %v556 = vmul.f32 %v551, %v554
  %v557 = vadd.f32 %v547, %v555
  %v558 = vadd.f32 %v548, %v556
  %559 = vset.pattern.permute.xlu0 5
  %560 = vperm.xlu0 %559, %v503
  %v561 = vpop.permute.xlu0 %560
  %v563 = vperm.slane %v499, 5
  %v564 = vperm.slane %v500, 5
  %v565 = vmul.f32 %v561, %v563
  %v566 = vmul.f32 %v561, %v564
  %v567 = vadd.f32 %v557, %v565
  %v568 = vadd.f32 %v558, %v566
  %569 = vset.pattern.permute.xlu0 6
  %570 = vperm.xlu0 %569, %v503
  %v571 = vpop.permute.xlu0 %570
  %v573 = vperm.slane %v499, 6
  %v574 = vperm.slane %v500, 6
  %v575 = vmul.f32 %v571, %v573
  %v576 = vmul.f32 %v571, %v574
  %v577 = vadd.f32 %v567, %v575
  %v578 = vadd.f32 %v568, %v576
  %579 = vset.pattern.permute.xlu0 7
  %580 = vperm.xlu0 %579, %v503
  %v581 = vpop.permute.xlu0 %580
  %v583 = vperm.slane %v499, 7
  %v584 = vperm.slane %v500, 7
  %v585 = vmul.f32 %v581, %v583
  %v586 = vmul.f32 %v581, %v584
  %v587 = vadd.f32 %v577, %v585
  %v588 = vadd.f32 %v578, %v586
  %589 = vset.pattern.permute.xlu0 8
  %590 = vperm.xlu0 %589, %v503
  %v591 = vpop.permute.xlu0 %590
  %v593 = vperm.slane %v501, 0
  %v594 = vperm.slane %v502, 0
  %v595 = vmul.f32 %v591, %v593
  %v596 = vmul.f32 %v591, %v594
  %v597 = vadd.f32 %v587, %v595
  %v598 = vadd.f32 %v588, %v596
  %599 = vset.pattern.permute.xlu0 9
  %600 = vperm.xlu0 %599, %v503
  %v601 = vpop.permute.xlu0 %600
  %v603 = vperm.slane %v501, 1
  %v604 = vperm.slane %v502, 1
  %v605 = vmul.f32 %v601, %v603
  %v606 = vmul.f32 %v601, %v604
  %v607 = vadd.f32 %v597, %v605
  %v608 = vadd.f32 %v598, %v606
  %609 = vset.pattern.permute.xlu0 10
  %610 = vperm.xlu0 %609, %v503
  %v611 = vpop.permute.xlu0 %610
  %v613 = vperm.slane %v501, 2
  %v614 = vperm.slane %v502, 2
  %v615 = vmul.f32 %v611, %v613
  %v616 = vmul.f32 %v611, %v614
  %v617 = vadd.f32 %v607, %v615
  %v618 = vadd.f32 %v608, %v616
  %619 = vset.pattern.permute.xlu0 11
  %620 = vperm.xlu0 %619, %v503
  %v621 = vpop.permute.xlu0 %620
  %v623 = vperm.slane %v501, 3
  %v624 = vperm.slane %v502, 3
  %v625 = vmul.f32 %v621, %v623
  %v626 = vmul.f32 %v621, %v624
  %v627 = vadd.f32 %v617, %v625
  %v628 = vadd.f32 %v618, %v626
  %629 = vset.pattern.permute.xlu0 12
  %630 = vperm.xlu0 %629, %v503
  %v631 = vpop.permute.xlu0 %630
  %v633 = vperm.slane %v501, 4
  %v634 = vperm.slane %v502, 4
  %v635 = vmul.f32 %v631, %v633
  %v636 = vmul.f32 %v631, %v634
  %v637 = vadd.f32 %v627, %v635
  %v638 = vadd.f32 %v628, %v636
  %639 = vset.pattern.permute.xlu0 13
  %640 = vperm.xlu0 %639, %v503
  %v641 = vpop.permute.xlu0 %640
  %v643 = vperm.slane %v501, 5
  %v644 = vperm.slane %v502, 5
  %v645 = vmul.f32 %v641, %v643
  %v646 = vmul.f32 %v641, %v644
  %v647 = vadd.f32 %v637, %v645
  %v648 = vadd.f32 %v638, %v646
  %649 = vset.pattern.permute.xlu0 14
  %650 = vperm.xlu0 %649, %v503
  %v651 = vpop.permute.xlu0 %650
  %v653 = vperm.slane %v501, 6
  %v654 = vperm.slane %v502, 6
  %v655 = vmul.f32 %v651, %v653
  %v656 = vmul.f32 %v651, %v654
  %v657 = vadd.f32 %v647, %v655
  %v658 = vadd.f32 %v648, %v656
  %659 = vset.pattern.permute.xlu0 15
  %660 = vperm.xlu0 %659, %v503
  %v661 = vpop.permute.xlu0 %660
  %v663 = vperm.slane %v501, 7
  %v664 = vperm.slane %v502, 7
  %v665 = vmul.f32 %v661, %v663
  %v666 = vmul.f32 %v661, %v664
  %v667 = vadd.f32 %v657, %v665
  %v668 = vadd.f32 %v658, %v666
  %v671 = vrot.slane %v668, 4
  %vm672 = vcmask 1043456
  %v673 = vsel %vm672, %v667, %v671
  %675 = vst [vmem:[%s2] sm:$0x77] %v673
  %v676 = vxor.u32 %v325, 2147483648
  %v677 = vxor.u32 %v339, 2147483648
  %v678 = vmul.f32 %v676, 1.442695
  %v679 = vpow.pop %v678
  %v680 = vmul.f32 %v677, 1.442695
  %v681 = vpow.pop %v680
  %v682 = vadd.f32 %v679, 1.0
  %v683 = vadd.f32 %v681, 1.0
  %v684 = vrcp.pop %v682
  %v685 = vmul.f32 %v682, %v684
  %v686 = vsub.f32 1.0, %v685
  %v687 = vmul.f32 %v684, %v686
  %v688 = vadd.f32 %v684, %v687
  %vm689 = vweird.f32 %v682
  %vm690 = vweird.f32 %v684
  %vm691 = vmor %vm689, %vm690
  %v692 = vsel %vm691, %v684, %v688
  %v693 = vand.u32 2147483647, %v682
  %vm694 = vcmp.eq.f32.partialorder %v693, 8.507059e+37
  %v695 = vand.u32 %v682, 2147483648
  %v696 = vor.u32 1.1754944e-38, %v695
  %v697 = vsel %vm694, %v696, %v692
  %v698 = vmul.f32 1.0, %v697
  %v699 = vrcp.pop %v683
  %v700 = vmul.f32 %v683, %v699
  %v701 = vsub.f32 1.0, %v700
  %v702 = vmul.f32 %v699, %v701
  %v703 = vadd.f32 %v699, %v702
  %vm704 = vweird.f32 %v683
  %vm705 = vweird.f32 %v699
  %vm706 = vmor %vm704, %vm705
  %v707 = vsel %vm706, %v699, %v703
  %v708 = vand.u32 2147483647, %v683
  %vm709 = vcmp.eq.f32.partialorder %v708, 8.507059e+37
  %v710 = vand.u32 %v683, 2147483648
  %v711 = vor.u32 1.1754944e-38, %v710
  %v712 = vsel %vm709, %v711, %v707
  %v713 = vmul.f32 1.0, %v712
  %v716 = vrot.slane %v713, 7
  %vm717 = vcmask 1040384
  %v718 = vsel %vm717, %v698, %v716
  %v720 = vlaneseq
  %vm721 = vcmp.ge.s32.totalorder %v720, 0
  %vm722 = vcmp.lt.s32.totalorder %v720, 256
  %vm723 = vmand %vm721, %vm722
  %s724 = scalar_lea.vmem %s2, 3
  %725 = vst.msk [vmem:[%s724] ss:$4 sm:$0x3] %vm723, %v718
  // Predicated region
  $region10: #{deep_anomaly_detector.1} parent=0 // pred_check
    _
  $region11: #{deep_anomaly_detector.1} parent=0 // pred_check_branch
    %727 = sbr.rel (0) target = $region13
  $region12: #{deep_anomaly_detector.1} parent=0 // pred_region
    _
  $region13: #{deep_anomaly_detector.1} parent=0 // pred_fallthru
    _
  // Predicated region
  $region14: #{deep_anomaly_detector.1} parent=0 // pred_check
    _
  $region15: #{deep_anomaly_detector.1} parent=0 // pred_check_branch
    %729 = sbr.rel (0) target = $region17
  $region16: #{deep_anomaly_detector.1} parent=0 // pred_region
    _
  $region17: #{deep_anomaly_detector.1} parent=0 // pred_fallthru
    _

</llo_original>
